<compile_context>
chip_gen: v7x
topology: tpu7x:2x2x1
jax: 0.10.0
libtpu: 0.0.40
codegen_flags: <defaults>
</compile_context>

<pallas_src>
import jax
import jax.numpy as jnp
from jax import lax
from jax.experimental import pallas as pl
from jax.experimental.pallas import tpu as pltpu


# ----------------------------- Pallas kernel -----------------------------

def _asgcn_fused_kernel(pwm_ref, t_ref, adj_ref,
                        w1_ref, b1_ref, w2_ref, b2_ref, r_ref):
    """One batch element per grid step.

    pwm_ref : (1, S, 2)  packed [position_weight, aspect_mask]
    t_ref   : (1, S, H2) text_out (BiLSTM output)
    adj_ref : (1, S, S)  adjacency
    w*_ref  : (H2, H2)   GCN weights (bf16)
    b*_ref  : (1, H2)    GCN biases  (f32)
    r_ref   : (1, 1, H2) pooled attention output
    """
    pwm = pwm_ref[0]                                   # (S, 2)
    posw = pwm[:, 0:1]                                 # (S, 1)
    msk = pwm[:, 1:2]                                  # (S, 1)
    t = t_ref[0]                                       # (S, H2) f32
    adj = adj_ref[0]                                   # (S, S)  f32

    # Degree-normalized adjacency: divide rows once (S values, EUP reciprocal)
    # instead of dividing the (S, H2) GCN output (twice) on the VPU.
    inv_deg = pl.reciprocal(jnp.sum(adj, axis=1, keepdims=True) + 1.0,
                            approx=True)               # (S, 1)
    adj_n = (adj * inv_deg).astype(jnp.bfloat16)       # (S, S) bf16

    def gcn_relu(x, w_ref, b_ref):
        # relu( adj_n @ ((posw * x) @ W) + b ), f32 accumulation on the MXU.
        xw = (posw * x).astype(jnp.bfloat16)           # (S, H2) bf16
        hidden = jnp.dot(xw, w_ref[...],
                         preferred_element_type=jnp.float32)
        out = jnp.dot(adj_n, hidden.astype(jnp.bfloat16),
                      preferred_element_type=jnp.float32) + b_ref[...]
        return jnp.maximum(out, 0.0)                   # (S, H2) f32

    x1 = gcn_relu(t, w1_ref, b1_ref)
    x2 = gcn_relu(x1, w2_ref, b2_ref)

    # Attention: sum_i (mask_i * x_i) . t_j  ==  alpha_mat.sum(dim=1)
    tb = t.astype(jnp.bfloat16)
    v = jnp.sum(msk * x2, axis=0, keepdims=True)       # (1, H2) f32
    s = lax.dot_general(v.astype(jnp.bfloat16), tb,
                        (((1,), (1,)), ((), ())),
                        preferred_element_type=jnp.float32)   # (1, S)

    m = jnp.max(s, axis=1, keepdims=True)
    e = jnp.exp(s - m)
    alpha = e * pl.reciprocal(jnp.sum(e, axis=1, keepdims=True),
                              approx=True)             # (1, S) softmax
    r = jnp.dot(alpha.astype(jnp.bfloat16), tb,
                preferred_element_type=jnp.float32)    # (1, H2)
    r_ref[0] = r


def asgcn_head(pwm, text_out, adj, w1, b1, w2, b2):
    """Fused gc1 -> relu -> gc2 -> relu -> mask -> attention -> pool."""
    B, S, H2 = text_out.shape
    r = pl.pallas_call(
        _asgcn_fused_kernel,
        out_shape=jax.ShapeDtypeStruct((B, 1, H2), jnp.float32),
        grid=(B,),
        in_specs=[
            pl.BlockSpec((1, S, 2), lambda i: (i, 0, 0)),    # posw|mask packed
            pl.BlockSpec((1, S, H2), lambda i: (i, 0, 0)),   # text_out
            pl.BlockSpec((1, S, S), lambda i: (i, 0, 0)),    # adj
            pl.BlockSpec((H2, H2), lambda i: (0, 0)),        # gc1 W (bf16)
            pl.BlockSpec((1, H2), lambda i: (0, 0)),         # gc1 b
            pl.BlockSpec((H2, H2), lambda i: (0, 0)),        # gc2 W (bf16)
            pl.BlockSpec((1, H2), lambda i: (0, 0)),         # gc2 b
        ],
        out_specs=pl.BlockSpec((1, 1, H2), lambda i: (i, 0, 0)),
        compiler_params=pltpu.CompilerParams(
            dimension_semantics=("parallel",)),              # batch across TCs
    )(pwm, text_out, adj, w1, b1, w2, b2)
    return r[:, 0, :]                                        # (B, H2)


# --------------------------- plain-JAX glue / prep ---------------------------
# TODO(synk): the sequential bidirectional LSTM recurrence stays in lax.scan
# (data-dependent length masking, S-step dependence); the input projection is
# hoisted out of the scan and the whole forward is jitted to kill per-step
# dispatch overhead.

def lstm_direction(x, lens, w_ih, w_hh, b_ih, b_hh, reverse):
    """Single-direction LSTM, PyTorch gate order (i, f, g, o), packed-sequence
    semantics: positions >= len produce zero output and do not update state."""
    B, S, _ = x.shape
    H = w_hh.shape[1]

    # Hoist the input projection: one (B,S,E)@(E,4H) matmul instead of S tiny ones.
    xg = jnp.einsum('bse,ge->bsg', x, w_ih) + b_ih + b_hh    # (B, S, 4H)
    ts = jnp.arange(S)
    if reverse:
        xg = xg[:, ::-1, :]
        ts = ts[::-1]
    xg_seq = jnp.transpose(xg, (1, 0, 2))                    # (S, B, 4H)

    def step(carry, inp):
        h, c = carry
        xt_g, t = inp
        gates = xt_g + h @ w_hh.T
        i = jax.nn.sigmoid(gates[:, 0:H])
        f = jax.nn.sigmoid(gates[:, H:2 * H])
        g = jnp.tanh(gates[:, 2 * H:3 * H])
        o = jax.nn.sigmoid(gates[:, 3 * H:4 * H])
        c_new = f * c + i * g
        h_new = o * jnp.tanh(c_new)
        valid = (t < lens)[:, None]
        h2 = jnp.where(valid, h_new, h)
        c2 = jnp.where(valid, c_new, c)
        out = jnp.where(valid, h_new, 0.0)
        return (h2, c2), out

    init = (jnp.zeros((B, H), jnp.float32), jnp.zeros((B, H), jnp.float32))
    _, outs = lax.scan(step, init, (xg_seq, ts))             # (S, B, H)
    outs = jnp.transpose(outs, (1, 0, 2))                    # (B, S, H)
    if reverse:
        outs = outs[:, ::-1, :]
    return outs


def position_weight(aspect_double_idx, text_len, aspect_len, seq_len):
    j = jnp.arange(seq_len, dtype=jnp.float32)[None, :]      # (1, S)
    a0 = aspect_double_idx[:, 0:1].astype(jnp.float32)
    a1 = aspect_double_idx[:, 1:2].astype(jnp.float32)
    tl = text_len[:, None].astype(jnp.float32)
    cl = tl - aspect_len[:, None].astype(jnp.float32)
    # guard against all-aspect sentences (cl == 0); the guarded branch is
    # never selected in that case, this just avoids generating inf/nan.
    cl = jnp.maximum(cl, 1.0)
    w_left = 1.0 - (a0 - j) / cl
    w_right = 1.0 - (j - a1) / cl
    w = jnp.where(j < a0, w_left,
                  jnp.where(j <= a1, 0.0,
                            jnp.where(j < tl, w_right, 0.0)))
    return w[:, :, None].astype(jnp.float32)                 # (B, S, 1)


def aspect_mask(aspect_double_idx, seq_len):
    j = jnp.arange(seq_len)[None, :]
    a0 = aspect_double_idx[:, 0:1]
    a1 = aspect_double_idx[:, 1:2]
    m = ((j >= a0) & (j <= a1)).astype(jnp.float32)
    return m[:, :, None]                                     # (B, S, 1)


def _preprocess(params, text_indices, aspect_indices, left_indices):
    text_len = jnp.sum(text_indices != 0, axis=-1)
    aspect_len = jnp.sum(aspect_indices != 0, axis=-1)
    left_len = jnp.sum(left_indices != 0, axis=-1)
    aspect_double_idx = jnp.stack([left_len, left_len + aspect_len - 1], axis=1)

    text = params['embedding'][text_indices]                 # (B, S, E)
    # nn.Dropout(0.3): eval-mode identity (deterministic inference).

    fwd = lstm_direction(text, text_len, params['w_ih_f'], params['w_hh_f'],
                         params['b_ih_f'], params['b_hh_f'], reverse=False)
    bwd = lstm_direction(text, text_len, params['w_ih_b'], params['w_hh_b'],
                         params['b_ih_b'], params['b_hh_b'], reverse=True)
    text_out = jnp.concatenate([fwd, bwd], axis=-1)          # (B, S, 2H)

    S = text.shape[1]
    posw = position_weight(aspect_double_idx, text_len, aspect_len, S)
    msk = aspect_mask(aspect_double_idx, S)
    return text_out, posw, msk


def asgcn_forward(params, text_indices, aspect_indices, left_indices, adj):
    text_out, posw, msk = _preprocess(params, text_indices, aspect_indices,
                                      left_indices)
    pwm = jnp.concatenate([posw, msk], axis=-1)              # (B, S, 2) packed
    w1 = params['gc1_w'].astype(jnp.bfloat16)                # bf16 MXU operands
    w2 = params['gc2_w'].astype(jnp.bfloat16)
    b1 = params['gc1_b'][None, :]
    b2 = params['gc2_b'][None, :]
    r = asgcn_head(pwm, text_out, adj, w1, b1, w2, b2)       # Pallas, (B, H2)
    # tiny (H2, P=3) polarity projection in XLA -> no 3-lane masked store in
    # the kernel's hot loop.
    return r @ params['fc_w'].T + params['fc_b']


def asgcn_reference(params, text_indices, aspect_indices, left_indices, adj):
    """Pure-jnp reference mirroring the PyTorch forward, for a sanity check."""
    text_out, posw, msk = _preprocess(params, text_indices, aspect_indices,
                                      left_indices)

    def gc(x, w, b):
        hidden = jnp.matmul(x, w)
        denom = jnp.sum(adj, axis=2, keepdims=True) + 1.0
        return jnp.matmul(adj, hidden) / denom + b

    x = jax.nn.relu(gc(posw * text_out, params['gc1_w'], params['gc1_b']))
    x = jax.nn.relu(gc(posw * x, params['gc2_w'], params['gc2_b']))
    x = msk * x
    alpha_mat = jnp.matmul(x, jnp.swapaxes(text_out, 1, 2))
    alpha = jax.nn.softmax(jnp.sum(alpha_mat, axis=1, keepdims=True), axis=2)
    r = jnp.matmul(alpha, text_out)[:, 0, :]
    return r @ params['fc_w'].T + params['fc_b']


# ------------------------------ parameter init ------------------------------

def make_params(key, vocab, embed_dim, hidden_dim, polarities_dim):
    H2 = 2 * hidden_dim
    keys = jax.random.split(key, 16)

    def u(kk, shape, scale):
        return jax.random.uniform(kk, shape, jnp.float32, -scale, scale)

    k_lstm = 1.0 / float(hidden_dim) ** 0.5
    k_fc = 1.0 / float(H2) ** 0.5
    emb = jax.random.normal(keys[0], (vocab, embed_dim), jnp.float32) * 0.5
    emb = emb.at[0].set(0.0)  # padding index
    return dict(
        embedding=emb,
        # bidirectional LSTM, PyTorch gate order (i, f, g, o)
        w_ih_f=u(keys[1], (4 * hidden_dim, embed_dim), k_lstm),
        w_hh_f=u(keys[2], (4 * hidden_dim, hidden_dim), k_lstm),
        b_ih_f=u(keys[3], (4 * hidden_dim,), k_lstm),
        b_hh_f=u(keys[4], (4 * hidden_dim,), k_lstm),
        w_ih_b=u(keys[5], (4 * hidden_dim, embed_dim), k_lstm),
        w_hh_b=u(keys[6], (4 * hidden_dim, hidden_dim), k_lstm),
        b_ih_b=u(keys[7], (4 * hidden_dim,), k_lstm),
        b_hh_b=u(keys[8], (4 * hidden_dim,), k_lstm),
        # GraphConvolution layers (weight is (in, out) as in the module)
        gc1_w=u(keys[9], (H2, H2), 0.1),
        gc1_b=u(keys[10], (H2,), 0.1),
        gc2_w=u(keys[11], (H2, H2), 0.1),
        gc2_b=u(keys[12], (H2,), 0.1),
        # final Linear (PyTorch layout: (out, in))
        fc_w=u(keys[13], (polarities_dim, H2), k_fc),
        fc_b=u(keys[14], (polarities_dim,), k_fc),
    )


# ----------------------------------- main -----------------------------------

if __name__ == "__main__":
    B, S, E, H, V, P = 2, 8, 32, 32, 20, 3   # batch, seq, embed, hidden, vocab, polarities
    key = jax.random.PRNGKey(0)
    kp, ka = jax.random.split(key)
    params = make_params(kp, V, E, H, P)

    # token index inputs (0 == pad); lengths: text=[7,5], aspect=[2,1], left=[2,2]
    text_indices = jnp.array([[3, 5, 7, 2, 9, 4, 6, 0],
                              [8, 2, 4, 1, 5, 0, 0, 0]], dtype=jnp.int32)
    aspect_indices = jnp.array([[7, 2, 0, 0, 0, 0, 0, 0],
                                [4, 0, 0, 0, 0, 0, 0, 0]], dtype=jnp.int32)
    left_indices = jnp.array([[3, 5, 0, 0, 0, 0, 0, 0],
                              [8, 2, 0, 0, 0, 0, 0, 0]], dtype=jnp.int32)
    adj = jax.random.uniform(ka, (B, S, S), jnp.float32)

    fwd = jax.jit(asgcn_forward)
    ref_fn = jax.jit(asgcn_reference)

    out = fwd(params, text_indices, aspect_indices, left_indices, adj)
    out = jax.block_until_ready(out)

    ref = ref_fn(params, text_indices, aspect_indices, left_indices, adj)
    ref = jax.block_until_ready(ref)

    assert out.shape == (B, P), out.shape
    assert jnp.allclose(out, ref, rtol=1e-2, atol=1e-2), (out, ref)
    print("KERNEL_OK")
</pallas_src>

<mosaic_0001>
module attributes {stable_mosaic.version = 11 : i64} {
  func.func @_asgcn_fused_kernel(%arg0: i32, %arg1: memref<1x8x2xf32, #tpu.memory_space<vmem>>, %arg2: memref<1x8x64xf32, #tpu.memory_space<vmem>>, %arg3: memref<1x8x8xf32, #tpu.memory_space<vmem>>, %arg4: memref<64x64xbf16, #tpu.memory_space<vmem>>, %arg5: memref<1x64xf32, #tpu.memory_space<vmem>>, %arg6: memref<64x64xbf16, #tpu.memory_space<vmem>>, %arg7: memref<1x64xf32, #tpu.memory_space<vmem>>, %arg8: memref<1x1x64xf32, #tpu.memory_space<vmem>>) attributes {dimension_semantics = [#tpu.dimension_semantics<parallel>], iteration_bounds = array<i64: 2>, scalar_prefetch = 0 : i64, scratch_operands = 0 : i64, tpu.core_type = #tpu.core_type<tc>, window_params = [{transform_indices = @transform_0, window_bounds = array<i64: 1, 8, 2>}, {transform_indices = @transform_1, window_bounds = array<i64: 1, 8, 64>}, {transform_indices = @transform_2, window_bounds = array<i64: 1, 8, 8>}, {pipeline_mode = #tpu.pipeline_mode<synchronous>, transform_indices = @transform_3, window_bounds = array<i64: 64, 64>}, {pipeline_mode = #tpu.pipeline_mode<synchronous>, transform_indices = @transform_4, window_bounds = array<i64: 1, 64>}, {pipeline_mode = #tpu.pipeline_mode<synchronous>, transform_indices = @transform_5, window_bounds = array<i64: 64, 64>}, {pipeline_mode = #tpu.pipeline_mode<synchronous>, transform_indices = @transform_6, window_bounds = array<i64: 1, 64>}, {transform_indices = @transform_7, window_bounds = array<i64: 1, 1, 64>}]} {
    %c0 = arith.constant 0 : index
    %c0_0 = arith.constant 0 : index
    %c0_1 = arith.constant 0 : index
    %0 = vector.load %arg1[%c0, %c0_0, %c0_1] : memref<1x8x2xf32, #tpu.memory_space<vmem>>, vector<1x8x2xf32>
    %1 = vector.shape_cast %0 : vector<1x8x2xf32> to vector<8x2xf32>
    %2 = vector.extract_strided_slice %1 {offsets = [0, 0], sizes = [8, 1], strides = [1, 1]} : vector<8x2xf32> to vector<8x1xf32>
    %3 = vector.extract_strided_slice %1 {offsets = [0, 1], sizes = [8, 1], strides = [1, 1]} : vector<8x2xf32> to vector<8x1xf32>
    %c0_2 = arith.constant 0 : index
    %c0_3 = arith.constant 0 : index
    %c0_4 = arith.constant 0 : index
    %4 = vector.load %arg2[%c0_2, %c0_3, %c0_4] : memref<1x8x64xf32, #tpu.memory_space<vmem>>, vector<1x8x64xf32>
    %5 = vector.shape_cast %4 : vector<1x8x64xf32> to vector<8x64xf32>
    %c0_5 = arith.constant 0 : index
    %c0_6 = arith.constant 0 : index
    %c0_7 = arith.constant 0 : index
    %6 = vector.load %arg3[%c0_5, %c0_6, %c0_7] : memref<1x8x8xf32, #tpu.memory_space<vmem>>, vector<1x8x8xf32>
    %7 = vector.shape_cast %6 : vector<1x8x8xf32> to vector<8x8xf32>
    %cst = arith.constant dense<0.000000e+00> : vector<8xf32>
    %8 = vector.multi_reduction <add>, %7, %cst [1] : vector<8x8xf32> to vector<8xf32>
    %9 = vector.shape_cast %8 : vector<8xf32> to vector<8x1xf32>
    %cst_8 = arith.constant 1.000000e+00 : f32
    %10 = vector.broadcast %cst_8 : f32 to vector<8x1xf32>
    %11 = arith.addf %9, %10 : vector<8x1xf32>
    %12 = tpu.reciprocal %11 {approx = true} : vector<8x1xf32> -> vector<8x1xf32>
    %13 = vector.broadcast %12 : vector<8x1xf32> to vector<8x8xf32>
    %14 = arith.mulf %7, %13 : vector<8x8xf32>
    %15 = arith.truncf %14 : vector<8x8xf32> to vector<8x8xbf16>
    %16 = vector.broadcast %2 : vector<8x1xf32> to vector<8x64xf32>
    %17 = arith.mulf %16, %5 : vector<8x64xf32>
    %18 = arith.truncf %17 : vector<8x64xf32> to vector<8x64xbf16>
    %c0_9 = arith.constant 0 : index
    %c0_10 = arith.constant 0 : index
    %19 = vector.load %arg4[%c0_9, %c0_10] : memref<64x64xbf16, #tpu.memory_space<vmem>>, vector<64x64xbf16>
    %cst_11 = arith.constant dense<0.000000e+00> : vector<8x64xf32>
    %20 = tpu.matmul %18, %19, %cst_11 {dimension_numbers = #tpu.dot_dimension_numbers<[1], [0], [0], [1], [0, 0, 1, 1], [], []>} : vector<8x64xbf16>, vector<64x64xbf16>, vector<8x64xf32> -> vector<8x64xf32>
    %21 = arith.truncf %20 : vector<8x64xf32> to vector<8x64xbf16>
    %cst_12 = arith.constant dense<0.000000e+00> : vector<8x64xf32>
    %22 = tpu.matmul %15, %21, %cst_12 {dimension_numbers = #tpu.dot_dimension_numbers<[1], [0], [0], [1], [0, 0, 1, 1], [], []>} : vector<8x8xbf16>, vector<8x64xbf16>, vector<8x64xf32> -> vector<8x64xf32>
    %c0_13 = arith.constant 0 : index
    %c0_14 = arith.constant 0 : index
    %23 = vector.load %arg5[%c0_13, %c0_14] : memref<1x64xf32, #tpu.memory_space<vmem>>, vector<1x64xf32>
    %24 = vector.broadcast %23 : vector<1x64xf32> to vector<8x64xf32>
    %25 = arith.addf %22, %24 : vector<8x64xf32>
    %cst_15 = arith.constant 0.000000e+00 : f32
    %26 = vector.broadcast %cst_15 : f32 to vector<8x64xf32>
    %27 = arith.maximumf %25, %26 : vector<8x64xf32>
    %28 = vector.broadcast %2 : vector<8x1xf32> to vector<8x64xf32>
    %29 = arith.mulf %28, %27 : vector<8x64xf32>
    %30 = arith.truncf %29 : vector<8x64xf32> to vector<8x64xbf16>
    %c0_16 = arith.constant 0 : index
    %c0_17 = arith.constant 0 : index
    %31 = vector.load %arg6[%c0_16, %c0_17] : memref<64x64xbf16, #tpu.memory_space<vmem>>, vector<64x64xbf16>
    %cst_18 = arith.constant dense<0.000000e+00> : vector<8x64xf32>
    %32 = tpu.matmul %30, %31, %cst_18 {dimension_numbers = #tpu.dot_dimension_numbers<[1], [0], [0], [1], [0, 0, 1, 1], [], []>} : vector<8x64xbf16>, vector<64x64xbf16>, vector<8x64xf32> -> vector<8x64xf32>
    %33 = arith.truncf %32 : vector<8x64xf32> to vector<8x64xbf16>
    %cst_19 = arith.constant dense<0.000000e+00> : vector<8x64xf32>
    %34 = tpu.matmul %15, %33, %cst_19 {dimension_numbers = #tpu.dot_dimension_numbers<[1], [0], [0], [1], [0, 0, 1, 1], [], []>} : vector<8x8xbf16>, vector<8x64xbf16>, vector<8x64xf32> -> vector<8x64xf32>
    %c0_20 = arith.constant 0 : index
    %c0_21 = arith.constant 0 : index
    %35 = vector.load %arg7[%c0_20, %c0_21] : memref<1x64xf32, #tpu.memory_space<vmem>>, vector<1x64xf32>
    %36 = vector.broadcast %35 : vector<1x64xf32> to vector<8x64xf32>
    %37 = arith.addf %34, %36 : vector<8x64xf32>
    %cst_22 = arith.constant 0.000000e+00 : f32
    %38 = vector.broadcast %cst_22 : f32 to vector<8x64xf32>
    %39 = arith.maximumf %37, %38 : vector<8x64xf32>
    %40 = arith.truncf %5 : vector<8x64xf32> to vector<8x64xbf16>
    %41 = vector.broadcast %3 : vector<8x1xf32> to vector<8x64xf32>
    %42 = arith.mulf %41, %39 : vector<8x64xf32>
    %cst_23 = arith.constant dense<0.000000e+00> : vector<64xf32>
    %43 = vector.multi_reduction <add>, %42, %cst_23 [0] : vector<8x64xf32> to vector<64xf32>
    %44 = vector.shape_cast %43 : vector<64xf32> to vector<1x64xf32>
    %45 = arith.truncf %44 : vector<1x64xf32> to vector<1x64xbf16>
    %cst_24 = arith.constant dense<0.000000e+00> : vector<1x8xf32>
    %46 = tpu.matmul %45, %40, %cst_24 {dimension_numbers = #tpu.dot_dimension_numbers<[1], [1], [0], [0], [0, 0, 1, 0], [], []>} : vector<1x64xbf16>, vector<8x64xbf16>, vector<1x8xf32> -> vector<1x8xf32>
    %cst_25 = arith.constant dense<0xFF800000> : vector<1xf32>
    %47 = vector.multi_reduction <maximumf>, %46, %cst_25 [1] : vector<1x8xf32> to vector<1xf32>
    %48 = vector.shape_cast %47 : vector<1xf32> to vector<1x1xf32>
    %49 = vector.broadcast %48 : vector<1x1xf32> to vector<1x8xf32>
    %50 = arith.subf %46, %49 : vector<1x8xf32>
    %51 = math.exp %50 : vector<1x8xf32>
    %cst_26 = arith.constant dense<0.000000e+00> : vector<1xf32>
    %52 = vector.multi_reduction <add>, %51, %cst_26 [1] : vector<1x8xf32> to vector<1xf32>
    %53 = vector.shape_cast %52 : vector<1xf32> to vector<1x1xf32>
    %54 = tpu.reciprocal %53 {approx = true} : vector<1x1xf32> -> vector<1x1xf32>
    %55 = vector.broadcast %54 : vector<1x1xf32> to vector<1x8xf32>
    %56 = arith.mulf %51, %55 : vector<1x8xf32>
    %57 = arith.truncf %56 : vector<1x8xf32> to vector<1x8xbf16>
    %cst_27 = arith.constant dense<0.000000e+00> : vector<1x64xf32>
    %58 = tpu.matmul %57, %40, %cst_27 {dimension_numbers = #tpu.dot_dimension_numbers<[1], [0], [0], [1], [0, 0, 1, 1], [], []>} : vector<1x8xbf16>, vector<8x64xbf16>, vector<1x64xf32> -> vector<1x64xf32>
    %c0_28 = arith.constant 0 : index
    %c0_29 = arith.constant 0 : index
    %c0_30 = arith.constant 0 : index
    %59 = vector.load %arg8[%c0_28, %c0_29, %c0_30] : memref<1x1x64xf32, #tpu.memory_space<vmem>>, vector<1x1x64xf32>
    %60 = vector.shape_cast %59 : vector<1x1x64xf32> to vector<1x64xf32>
    %61 = vector.shape_cast %58 : vector<1x64xf32> to vector<1x1x64xf32>
    tpu.vector_store %arg8[%c0_28, %c0_29, %c0_30], %61 {strides = array<i32>} : memref<1x1x64xf32, #tpu.memory_space<vmem>>, vector<1x1x64xf32>,
    return
  }
  func.func @transform_0(%arg0: i32) -> (i32, i32, i32) {
    %c0_i32 = arith.constant 0 : i32
    %c0_i32_0 = arith.constant 0 : i32
    %c0_i32_1 = arith.constant 0 : i32
    return %arg0, %c0_i32, %c0_i32_0 : i32, i32, i32
  }
  func.func @transform_1(%arg0: i32) -> (i32, i32, i32) {
    %c0_i32 = arith.constant 0 : i32
    %c0_i32_0 = arith.constant 0 : i32
    %c0_i32_1 = arith.constant 0 : i32
    return %arg0, %c0_i32, %c0_i32_0 : i32, i32, i32
  }
  func.func @transform_2(%arg0: i32) -> (i32, i32, i32) {
    %c0_i32 = arith.constant 0 : i32
    %c0_i32_0 = arith.constant 0 : i32
    %c0_i32_1 = arith.constant 0 : i32
    return %arg0, %c0_i32, %c0_i32_0 : i32, i32, i32
  }
  func.func @transform_3(%arg0: i32) -> (i32, i32) {
    %c0_i32 = arith.constant 0 : i32
    %c0_i32_0 = arith.constant 0 : i32
    %c0_i32_1 = arith.constant 0 : i32
    return %c0_i32, %c0_i32_0 : i32, i32
  }
  func.func @transform_4(%arg0: i32) -> (i32, i32) {
    %c0_i32 = arith.constant 0 : i32
    %c0_i32_0 = arith.constant 0 : i32
    %c0_i32_1 = arith.constant 0 : i32
    return %c0_i32, %c0_i32_0 : i32, i32
  }
  func.func @transform_5(%arg0: i32) -> (i32, i32) {
    %c0_i32 = arith.constant 0 : i32
    %c0_i32_0 = arith.constant 0 : i32
    %c0_i32_1 = arith.constant 0 : i32
    return %c0_i32, %c0_i32_0 : i32, i32
  }
  func.func @transform_6(%arg0: i32) -> (i32, i32) {
    %c0_i32 = arith.constant 0 : i32
    %c0_i32_0 = arith.constant 0 : i32
    %c0_i32_1 = arith.constant 0 : i32
    return %c0_i32, %c0_i32_0 : i32, i32
  }
  func.func @transform_7(%arg0: i32) -> (i32, i32, i32) {
    %c0_i32 = arith.constant 0 : i32
    %c0_i32_0 = arith.constant 0 : i32
    %c0_i32_1 = arith.constant 0 : i32
    return %arg0, %c0_i32, %c0_i32_0 : i32, i32, i32
  }
}

</mosaic_0001>

<llo_original>
// kernel: custom-call.2
$region0: #{custom-call.2}
  %s0 = inlined_call_operand.vmem [shape: bf16[2,32], index: 0, kind: output, shape index: {}]

// kernel: custom-call.3
$region0: #{custom-call.3}
  %s0 = inlined_call_operand.vmem [shape: f32[2,32], index: 0, kind: output, shape index: {}]

// kernel: asgcn_forward.1
$region0: #{asgcn_forward.1}
  #allocation0 [shape = 'u32[]', space=smem, size = 0x4, offset = 0x4, fixed_abs, tag = 'smem constant byte address 0x4 - core index']
  #allocation1 [shape = 'u32[144,128]{1,0:T(1,128)}', space=vmem, size = 0x12000, scoped, tag = 'internal scratch']
  %s0 = inlined_call_operand.vmem [shape: f32[2,8,2], index: 0, kind: input, shape index: {}]
  %s1 = inlined_call_operand.vmem [shape: f32[2,8,64], index: 1, kind: input, shape index: {}]
  %s2 = inlined_call_operand.vmem [shape: f32[2,8,8], index: 2, kind: input, shape index: {}]
  %s3 = inlined_call_operand.vmem [shape: bf16[64,64], index: 3, kind: input, shape index: {}]
  %s4 = inlined_call_operand.vmem [shape: f32[1,64], index: 4, kind: input, shape index: {}]
  %s5 = inlined_call_operand.vmem [shape: bf16[64,64], index: 5, kind: input, shape index: {}]
  %s6 = inlined_call_operand.vmem [shape: f32[1,64], index: 6, kind: input, shape index: {}]
  %s7 = inlined_call_operand.vmem [shape: f32[2,1,64], index: 7, kind: output, shape index: {}]
  %s8 = sld [smem:[#allocation0]]
  $region61: #{asgcn_forward.1} parent=0
    _
  %s10 = ssub.s32 1, %s8
  %s11 = scalar_select 0, %s10, %s8
  loop: start=0, step=1, limit=4
  $region2: #{asgcn_forward.1} parent=0 // loop_pre_header
    _
  $region3: #{asgcn_forward.1} parent=0 // loop_header
    %s13 = sphi 0, %s17
    %p14 = scmp.ge.s32.totalorder %s13, 4
    %s23 = sphi 0, %s25
    %s26 = sphi 0, %s23
    %s27 = sphi 0, %s26
    %s43 = sphi 0, %s27
    %s49 = sphi 0, %s51
    %s52 = sphi 0, %s49
    %s53 = sphi 0, %s52
    %s69 = sphi 0, %s53
    %s75 = sphi 0, %s77
    %s78 = sphi 0, %s75
    %s79 = sphi 0, %s78
    %s95 = sphi 0, %s79
    %s99 = sphi 0, %s99
    %s101 = sphi 0, %s99
    %s102 = sphi 0, %s101
    %s116 = sphi 0, %s102
    %s120 = sphi 0, %s120
    %s122 = sphi 0, %s120
    %s123 = sphi 0, %s122
    %s137 = sphi 0, %s123
    %s141 = sphi 0, %s141
    %s143 = sphi 0, %s141
    %s144 = sphi 0, %s143
    %s158 = sphi 0, %s144
    %s162 = sphi 0, %s162
    %s164 = sphi 0, %s162
    %s165 = sphi 0, %s164
    %s179 = sphi 0, %s165
    %s185 = sphi 0, %s187
    %s188 = sphi 0, %s185
    %s189 = sphi 0, %s188
    %s205 = sphi 0, %s189
  $region4: #{asgcn_forward.1} parent=0 // loop_header_branch
    %16 = sbr.rel (%p14) target = $region8
  $region5: #{asgcn_forward.1} parent=0 // loop_body
    %s18 = ssub.s32 %s13, 1
    %s19 = ssub.s32 %s13, 2
    %s20 = sadd.s32 %s13, 1
    %s21 = ssub.s32 %s13, %s20
    %p22 = scmp.eq.s32.totalorder %s21, 0
    %s24 = sadd.s32 %s23, 1
    %s25 = scalar_select %p22, %s23, %s24
    %p28 = pneg %p22
    %p29 = scmp.eq.s32.totalorder %s13, 1
    %p30 = por %p28, %p29
    %p31 = scmp.ne.s32.totalorder %s23, %s26
    %p32 = scmp.eq.s32.totalorder %s13, 0
    %p33 = por %p31, %p32
    %p34 = scmp.ne.s32.totalorder %s23, %s26
    %p35 = scmp.eq.s32.totalorder %s18, 1
    %p36 = por %p34, %p35
    %p37 = scmp.ne.s32.totalorder %s26, %s27
    %p38 = scmp.eq.s32.totalorder %s18, 0
    %p39 = por %p37, %p38
    %p40 = scmp.ne.s32.totalorder %s26, %s27
    %p41 = scmp.eq.s32.totalorder %s19, 1
    %p42 = por %p40, %p41
    %p44 = scmp.ne.s32.totalorder %s27, %s43
    %p45 = scmp.eq.s32.totalorder %s19, 0
    %p46 = por %p44, %p45
    %s47 = ssub.s32 %s13, %s20
    %p48 = scmp.eq.s32.totalorder %s47, 0
    %s50 = sadd.s32 %s49, 1
    %s51 = scalar_select %p48, %s49, %s50
    %p54 = pneg %p48
    %p55 = scmp.eq.s32.totalorder %s13, 1
    %p56 = por %p54, %p55
    %p57 = scmp.ne.s32.totalorder %s49, %s52
    %p58 = scmp.eq.s32.totalorder %s13, 0
    %p59 = por %p57, %p58
    %p60 = scmp.ne.s32.totalorder %s49, %s52
    %p61 = scmp.eq.s32.totalorder %s18, 1
    %p62 = por %p60, %p61
    %p63 = scmp.ne.s32.totalorder %s52, %s53
    %p64 = scmp.eq.s32.totalorder %s18, 0
    %p65 = por %p63, %p64
    %p66 = scmp.ne.s32.totalorder %s52, %s53
    %p67 = scmp.eq.s32.totalorder %s19, 1
    %p68 = por %p66, %p67
    %p70 = scmp.ne.s32.totalorder %s53, %s69
    %p71 = scmp.eq.s32.totalorder %s19, 0
    %p72 = por %p70, %p71
    %s73 = ssub.s32 %s13, %s20
    %p74 = scmp.eq.s32.totalorder %s73, 0
    %s76 = sadd.s32 %s75, 1
    %s77 = scalar_select %p74, %s75, %s76
    %p80 = pneg %p74
    %p81 = scmp.eq.s32.totalorder %s13, 1
    %p82 = por %p80, %p81
    %p83 = scmp.ne.s32.totalorder %s75, %s78
    %p84 = scmp.eq.s32.totalorder %s13, 0
    %p85 = por %p83, %p84
    %p86 = scmp.ne.s32.totalorder %s75, %s78
    %p87 = scmp.eq.s32.totalorder %s18, 1
    %p88 = por %p86, %p87
    %p89 = scmp.ne.s32.totalorder %s78, %s79
    %p90 = scmp.eq.s32.totalorder %s18, 0
    %p91 = por %p89, %p90
    %p92 = scmp.ne.s32.totalorder %s78, %s79
    %p93 = scmp.eq.s32.totalorder %s19, 1
    %p94 = por %p92, %p93
    %p96 = scmp.ne.s32.totalorder %s79, %s95
    %p97 = scmp.eq.s32.totalorder %s19, 0
    %p98 = por %p96, %p97
    %s100 = sadd.s32 %s99, 1
    %p103 = scmp.eq.s32.totalorder %s13, 1
    %p104 = scmp.ne.s32.totalorder %s99, %s101
    %p105 = scmp.eq.s32.totalorder %s13, 0
    %p106 = por %p104, %p105
    %p107 = scmp.ne.s32.totalorder %s99, %s101
    %p108 = scmp.eq.s32.totalorder %s18, 1
    %p109 = por %p107, %p108
    %p110 = scmp.ne.s32.totalorder %s101, %s102
    %p111 = scmp.eq.s32.totalorder %s18, 0
    %p112 = por %p110, %p111
    %p113 = scmp.ne.s32.totalorder %s101, %s102
    %p114 = scmp.eq.s32.totalorder %s19, 1
    %p115 = por %p113, %p114
    %p117 = scmp.ne.s32.totalorder %s102, %s116
    %p118 = scmp.eq.s32.totalorder %s19, 0
    %p119 = por %p117, %p118
    %s121 = sadd.s32 %s120, 1
    %p124 = scmp.eq.s32.totalorder %s13, 1
    %p125 = scmp.ne.s32.totalorder %s120, %s122
    %p126 = scmp.eq.s32.totalorder %s13, 0
    %p127 = por %p125, %p126
    %p128 = scmp.ne.s32.totalorder %s120, %s122
    %p129 = scmp.eq.s32.totalorder %s18, 1
    %p130 = por %p128, %p129
    %p131 = scmp.ne.s32.totalorder %s122, %s123
    %p132 = scmp.eq.s32.totalorder %s18, 0
    %p133 = por %p131, %p132
    %p134 = scmp.ne.s32.totalorder %s122, %s123
    %p135 = scmp.eq.s32.totalorder %s19, 1
    %p136 = por %p134, %p135
    %p138 = scmp.ne.s32.totalorder %s123, %s137
    %p139 = scmp.eq.s32.totalorder %s19, 0
    %p140 = por %p138, %p139
    %s142 = sadd.s32 %s141, 1
    %p145 = scmp.eq.s32.totalorder %s13, 1
    %p146 = scmp.ne.s32.totalorder %s141, %s143
    %p147 = scmp.eq.s32.totalorder %s13, 0
    %p148 = por %p146, %p147
    %p149 = scmp.ne.s32.totalorder %s141, %s143
    %p150 = scmp.eq.s32.totalorder %s18, 1
    %p151 = por %p149, %p150
    %p152 = scmp.ne.s32.totalorder %s143, %s144
    %p153 = scmp.eq.s32.totalorder %s18, 0
    %p154 = por %p152, %p153
    %p155 = scmp.ne.s32.totalorder %s143, %s144
    %p156 = scmp.eq.s32.totalorder %s19, 1
    %p157 = por %p155, %p156
    %p159 = scmp.ne.s32.totalorder %s144, %s158
    %p160 = scmp.eq.s32.totalorder %s19, 0
    %p161 = por %p159, %p160
    %s163 = sadd.s32 %s162, 1
    %p166 = scmp.eq.s32.totalorder %s13, 1
    %p167 = scmp.ne.s32.totalorder %s162, %s164
    %p168 = scmp.eq.s32.totalorder %s13, 0
    %p169 = por %p167, %p168
    %p170 = scmp.ne.s32.totalorder %s162, %s164
    %p171 = scmp.eq.s32.totalorder %s18, 1
    %p172 = por %p170, %p171
    %p173 = scmp.ne.s32.totalorder %s164, %s165
    %p174 = scmp.eq.s32.totalorder %s18, 0
    %p175 = por %p173, %p174
    %p176 = scmp.ne.s32.totalorder %s164, %s165
    %p177 = scmp.eq.s32.totalorder %s19, 1
    %p178 = por %p176, %p177
    %p180 = scmp.ne.s32.totalorder %s165, %s179
    %p181 = scmp.eq.s32.totalorder %s19, 0
    %p182 = por %p180, %p181
    %s183 = ssub.s32 %s13, %s20
    %p184 = scmp.eq.s32.totalorder %s183, 0
    %s186 = sadd.s32 %s185, 1
    %s187 = scalar_select %p184, %s185, %s186
    %p190 = pneg %p184
    %p191 = scmp.eq.s32.totalorder %s13, 1
    %p192 = por %p190, %p191
    %p193 = scmp.ne.s32.totalorder %s185, %s188
    %p194 = scmp.eq.s32.totalorder %s13, 0
    %p195 = por %p193, %p194
    %p196 = scmp.ne.s32.totalorder %s185, %s188
    %p197 = scmp.eq.s32.totalorder %s18, 1
    %p198 = por %p196, %p197
    %p199 = scmp.ne.s32.totalorder %s188, %s189
    %p200 = scmp.eq.s32.totalorder %s18, 0
    %p201 = por %p199, %p200
    %p202 = scmp.ne.s32.totalorder %s188, %s189
    %p203 = scmp.eq.s32.totalorder %s19, 1
    %p204 = por %p202, %p203
    %p206 = scmp.ne.s32.totalorder %s189, %s205
    %p207 = scmp.eq.s32.totalorder %s19, 0
    %p208 = por %p206, %p207
    %p209 = scmp.le.s32.totalorder 1, %s13
    %p210 = scmp.lt.s32.totalorder %s13, 3
    %p211 = pnand %p209, %p210
    %p212 = pneg %p211
    // Predicated region
    $region9: #{asgcn_forward.1} parent=5 // pred_check
      _
    $region10: #{asgcn_forward.1} parent=5 // pred_check_branch
      %214 = sbr.rel (%p211) target = $region12
    $region11: #{asgcn_forward.1} parent=5 // pred_region
      %s215 = ssub.s32 %s13, 1
      // Predicated region
      $region13: #{asgcn_forward.1} parent=11 // pred_check
        %p216 = pneg %p112
      $region14: #{asgcn_forward.1} parent=11 // pred_check_branch
        %218 = sbr.rel (%p216) target = $region16
      $region15: #{asgcn_forward.1} parent=11 // pred_region
        _
      $region16: #{asgcn_forward.1} parent=11 // pred_fallthru
        _
      // Predicated region
      $region17: #{asgcn_forward.1} parent=11 // pred_check
        %p219 = pneg %p133
      $region18: #{asgcn_forward.1} parent=11 // pred_check_branch
        %221 = sbr.rel (%p219) target = $region20
      $region19: #{asgcn_forward.1} parent=11 // pred_region
        _
      $region20: #{asgcn_forward.1} parent=11 // pred_fallthru
        _
      // Predicated region
      $region21: #{asgcn_forward.1} parent=11 // pred_check
        %p222 = pneg %p154
      $region22: #{asgcn_forward.1} parent=11 // pred_check_branch
        %224 = sbr.rel (%p222) target = $region24
      $region23: #{asgcn_forward.1} parent=11 // pred_region
        _
      $region24: #{asgcn_forward.1} parent=11 // pred_fallthru
        _
      // Predicated region
      $region25: #{asgcn_forward.1} parent=11 // pred_check
        %p225 = pneg %p175
      $region26: #{asgcn_forward.1} parent=11 // pred_check_branch
        %227 = sbr.rel (%p225) target = $region28
      $region27: #{asgcn_forward.1} parent=11 // pred_region
        _
      $region28: #{asgcn_forward.1} parent=11 // pred_fallthru
        _
    $region12: #{asgcn_forward.1} parent=5 // pred_fallthru
      _
    %p228 = scmp.lt.s32.totalorder %s13, 2
    // Predicated region
    $region29: #{asgcn_forward.1} parent=5 // pred_check
      %p229 = pneg %p228
    $region30: #{asgcn_forward.1} parent=5 // pred_check_branch
      %231 = sbr.rel (%p229) target = $region32
    $region31: #{asgcn_forward.1} parent=5 // pred_region
      // Predicated region
      $region33: #{asgcn_forward.1} parent=31 // pred_check
        %p232 = pneg %p33
      $region34: #{asgcn_forward.1} parent=31 // pred_check_branch
        %234 = sbr.rel (%p232) target = $region36
      $region35: #{asgcn_forward.1} parent=31 // pred_region
        %p235 = scmp.lt.s32.totalorder %s13, 1
        %s236 = scalar_select %p235, %s13, 1
        %s237 = smul.addr %s236, 8
        %s238 = scalar_lea.vmem %s0, %s237
      $region36: #{asgcn_forward.1} parent=31 // pred_fallthru
        _
      // Predicated region
      $region37: #{asgcn_forward.1} parent=31 // pred_check
        %p239 = pneg %p59
      $region38: #{asgcn_forward.1} parent=31 // pred_check_branch
        %241 = sbr.rel (%p239) target = $region40
      $region39: #{asgcn_forward.1} parent=31 // pred_region
        %p242 = scmp.lt.s32.totalorder %s13, 1
        %s243 = scalar_select %p242, %s13, 1
        %s244 = smul.addr %s243, 8
        %s245 = scalar_lea.vmem %s1, %s244
      $region40: #{asgcn_forward.1} parent=31 // pred_fallthru
        _
      // Predicated region
      $region41: #{asgcn_forward.1} parent=31 // pred_check
        %p246 = pneg %p85
      $region42: #{asgcn_forward.1} parent=31 // pred_check_branch
        %248 = sbr.rel (%p246) target = $region44
      $region43: #{asgcn_forward.1} parent=31 // pred_region
        %p249 = scmp.lt.s32.totalorder %s13, 1
        %s250 = scalar_select %p249, %s13, 1
        %s251 = smul.addr %s250, 8
        %s252 = scalar_lea.vmem %s2, %s251
      $region44: #{asgcn_forward.1} parent=31 // pred_fallthru
        _
    $region32: #{asgcn_forward.1} parent=5 // pred_fallthru
      _
    %p253 = scmp.le.s32.totalorder 1, %s13
    %p254 = scmp.lt.s32.totalorder %s13, 3
    %p255 = pnand %p253, %p254
    %p256 = pneg %p255
    // Predicated region
    $region45: #{asgcn_forward.1} parent=5 // pred_check
      _
    $region46: #{asgcn_forward.1} parent=5 // pred_check_branch
      %258 = sbr.rel (%p255) target = $region48
    $region47: #{asgcn_forward.1} parent=5 // pred_region
      %s259 = ssub.s32 %s13, 1
      %p260 = scmp.lt.s32.totalorder %s18, 1
      %s261 = scalar_select %p260, %s18, 1
      %s262 = smul.addr %s261, 8
      %s263 = scalar_lea.vmem %s0, %s262
      %p264 = pneg %p39
      %p265 = pneg %p36
      %p266 = scmp.lt.s32.totalorder %s18, 1
      %s267 = scalar_select %p266, %s18, 1
      %s268 = smul.addr %s267, 8
      %s269 = scalar_lea.vmem %s1, %s268
      %p270 = pneg %p65
      %p271 = pneg %p62
      %p272 = scmp.lt.s32.totalorder %s18, 1
      %s273 = scalar_select %p272, %s18, 1
      %s274 = smul.addr %s273, 8
      %s275 = scalar_lea.vmem %s2, %s274
      %p276 = pneg %p91
      %p277 = pneg %p88
      %p278 = pneg %p112
      %p279 = pneg %p109
      %p280 = pneg %p133
      %p281 = pneg %p130
      %p282 = pneg %p154
      %p283 = pneg %p151
      %p284 = pneg %p175
      %p285 = pneg %p172
      %p286 = pneg %p201
      %p287 = pneg %p198
      %p288 = scmp.lt.s32.totalorder %s18, 1
      %s289 = scalar_select %p288, %s18, 1
      %s290 = scalar_lea.vmem %s7, %s289
      %p291 = scmp.lt.s32.totalorder %s18, 1
      %s292 = scalar_select %p291, %s18, 1
      %s293 = smul.addr %s292, 8
      %s294 = scalar_lea.vmem %s0, %s293
      %p295 = scmp.lt.s32.totalorder %s18, 1
      %s296 = scalar_select %p295, %s18, 1
      %s297 = smul.addr %s296, 8
      %s298 = scalar_lea.vmem %s1, %s297
      %p299 = scmp.lt.s32.totalorder %s18, 1
      %s300 = scalar_select %p299, %s18, 1
      %s301 = smul.addr %s300, 8
      %s302 = scalar_lea.vmem %s2, %s301
      %p303 = scmp.lt.s32.totalorder %s18, 1
      %s304 = scalar_select %p303, %s18, 1
      %s305 = scalar_lea.vmem %s7, %s304
      %v307 = vld [vmem:[%s294] sm:$0xff]
      %v308 = vld [vmem:[%s298] sm:$0xff]
      %v309 = vld [vmem:[%s302] sm:$0xff]
      %vm310 = vcmask 64512
      %v311 = vsel %vm310, %v309, 0.0
      %312 = vadd.xlane.f32.xlu0 %v311
      %v313 = vpop.xlane.xlu0 %312
      %v314 = vadd.f32 %v313, 1.0
      %v315 = vrcp.pop %v314
      %v316 = vmul.f32 %v309, %v315
      %v317 = vpack.c.bf16 %v316, %v316
      %319 = vset.pattern.permute.xlu0 0
      %320 = vperm.xlu0 %319, %v307
      %v321 = vpop.permute.xlu0 %320
      %v323 = vmul.f32 %v321, %v308
      %v324 = vpack.c.bf16 %v323, %v323
      %v325 = vld [vmem:[%s3] sm:$0xf]
      %v326 = vld [vmem:[%s3 + $0x4] sm:$0xf]
      %v327 = vld [vmem:[%s3 + $0x8] sm:$0xf]
      %v328 = vld [vmem:[%s3 + $0xc] sm:$0xf]
      %v329 = vld [vmem:[%s3 + $0x10] sm:$0xf]
      %v330 = vld [vmem:[%s3 + $0x14] sm:$0xf]
      %v331 = vld [vmem:[%s3 + $0x18] sm:$0xf]
      %v332 = vld [vmem:[%s3 + $0x1c] sm:$0xf]
      %v341 = vunpack.c.l.b16 %v325
      %v342 = vunpack.c.l.b16 %v326
      %v343 = vunpack.c.l.b16 %v327
      %v344 = vunpack.c.l.b16 %v328
      %v345 = vunpack.c.l.b16 %v329
      %v346 = vunpack.c.l.b16 %v330
      %v347 = vunpack.c.l.b16 %v331
      %v348 = vunpack.c.l.b16 %v332
      %v349 = vpack.c.b16 %v342, %v341
      %v350 = vpack.c.b16 %v344, %v343
      %v351 = vpack.c.b16 %v346, %v345
      %v352 = vpack.c.b16 %v348, %v347
      %vm357 = vcmask 523264
      %v359 = vsel %vm357, %v324, 0
      %361 = vmatprep.subr.bf16.mxu0 0
      %362 = vmatpush1.bf16.msra.mxu0 %v349
      %363 = vmatprep.subr.bf16.mxu0 0
      %364 = vmatpush1.bf16.msra.mxu0 %v350
      %365 = vmatprep.subr.bf16.mxu0 0
      %366 = vmatpush1.bf16.msra.mxu0 %v351
      %367 = vmatprep.subr.bf16.mxu0 0
      %368 = vmatpush1.bf16.msra.mxu0 %v352
      %369 = vmatprep.subr.bf16.mxu0 0
      %370 = vmatpush1.bf16.msra.mxu0 0
      %371 = vmatprep.subr.bf16.mxu0 0
      %372 = vmatpush1.bf16.msra.mxu0 0
      %373 = vmatprep.subr.bf16.mxu0 0
      %374 = vmatpush1.bf16.msra.mxu0 0
      %375 = vmatprep.subr.bf16.mxu0 0
      %376 = vmatpush1.bf16.msra.mxu0 0
      %377 = vmatprep.subr.bf16.mxu0 0
      %378 = vmatpush1.bf16.msra.mxu0 0
      %379 = vmatprep.subr.bf16.mxu0 0
      %380 = vmatpush1.bf16.msra.mxu0 0
      %381 = vmatprep.subr.bf16.mxu0 0
      %382 = vmatpush1.bf16.msra.mxu0 0
      %383 = vmatprep.subr.bf16.mxu0 0
      %384 = vmatpush1.bf16.msra.mxu0 0
      %385 = vmatprep.subr.bf16.mxu0 0
      %386 = vmatpush1.bf16.msra.mxu0 0
      %387 = vmatprep.subr.bf16.mxu0 0
      %388 = vmatpush1.bf16.msra.mxu0 0
      %389 = vmatprep.subr.bf16.mxu0 0
      %390 = vmatpush1.bf16.msra.mxu0 0
      %391 = vmatprep.subr.bf16.mxu0 0
      %392 = vmatpush1.bf16.msra.mxu0 0
      %393 = vmatprep.mubr.bf16.mxu0 0
      %394 = vmatmul.mubr.bf16.gmra.mrb[0].mxu0 %v359
      %v395 = vpop.f32.mrb[0].mxu0
      %v396 = vadd.f32 0.0, %v395
      %v397 = vpop.f32.mrb[0].mxu0
      %v398 = vpop.f32.mrb[0].mxu0
      %v399 = vpop.f32.mrb[0].mxu0
      %400 = vdwg.mxu0
      %v401 = vpack.c.bf16 %v396, %v396
      %v402 = vld [vmem:[%s4] sm:$0x1]
      %v404 = vlaneseq
      %v405 = vshrl.u32 %v404, 7
      %v406 = vsub.s32 0, %v405
      %v407 = vrot.slane %v402, %v406
      %v410 = vsel %vm310, %v317, 0
      %vm412 = vcmask 1043456
      %v414 = vsel %vm412, %v401, 0
      %416 = vmatprep.subr.bf16.mxu0 0
      %417 = vmatpush1.bf16.msra.mxu0 %v414
      %418 = vmatprep.subr.bf16.mxu0 0
      %419 = vmatpush1.bf16.msra.mxu0 0
      %420 = vmatprep.subr.bf16.mxu0 0
      %421 = vmatpush1.bf16.msra.mxu0 0
      %422 = vmatprep.subr.bf16.mxu0 0
      %423 = vmatpush1.bf16.msra.mxu0 0
      %424 = vmatprep.subr.bf16.mxu0 0
      %425 = vmatpush1.bf16.msra.mxu0 0
      %426 = vmatprep.subr.bf16.mxu0 0
      %427 = vmatpush1.bf16.msra.mxu0 0
      %428 = vmatprep.subr.bf16.mxu0 0
      %429 = vmatpush1.bf16.msra.mxu0 0
      %430 = vmatprep.subr.bf16.mxu0 0
      %431 = vmatpush1.bf16.msra.mxu0 0
      %432 = vmatprep.subr.bf16.mxu0 0
      %433 = vmatpush1.bf16.msra.mxu0 0
      %434 = vmatprep.subr.bf16.mxu0 0
      %435 = vmatpush1.bf16.msra.mxu0 0
      %436 = vmatprep.subr.bf16.mxu0 0
      %437 = vmatpush1.bf16.msra.mxu0 0
      %438 = vmatprep.subr.bf16.mxu0 0
      %439 = vmatpush1.bf16.msra.mxu0 0
      %440 = vmatprep.subr.bf16.mxu0 0
      %441 = vmatpush1.bf16.msra.mxu0 0
      %442 = vmatprep.subr.bf16.mxu0 0
      %443 = vmatpush1.bf16.msra.mxu0 0
      %444 = vmatprep.subr.bf16.mxu0 0
      %445 = vmatpush1.bf16.msra.mxu0 0
      %446 = vmatprep.subr.bf16.mxu0 0
      %447 = vmatpush1.bf16.msra.mxu0 0
      %448 = vmatprep.mubr.bf16.mxu0 0
      %449 = vmatmul.mubr.bf16.gmra.mrb[0].mxu0 %v410
      %v450 = vpop.f32.mrb[0].mxu0
      %v451 = vadd.f32 %v407, %v450
      %v452 = vpop.f32.mrb[0].mxu0
      %v453 = vpop.f32.mrb[0].mxu0
      %v454 = vpop.f32.mrb[0].mxu0
      %455 = vdwg.mxu0
      %v456 = vmax.f32 %v451, 0.0
      %v457 = vmul.f32 %v321, %v456
      %v458 = vpack.c.bf16 %v457, %v457
      %v459 = vld [vmem:[%s5] sm:$0xf]
      %v460 = vld [vmem:[%s5 + $0x4] sm:$0xf]
      %v461 = vld [vmem:[%s5 + $0x8] sm:$0xf]
      %v462 = vld [vmem:[%s5 + $0xc] sm:$0xf]
      %v463 = vld [vmem:[%s5 + $0x10] sm:$0xf]
      %v464 = vld [vmem:[%s5 + $0x14] sm:$0xf]
      %v465 = vld [vmem:[%s5 + $0x18] sm:$0xf]
      %v466 = vld [vmem:[%s5 + $0x1c] sm:$0xf]
      %v475 = vunpack.c.l.b16 %v459
      %v476 = vunpack.c.l.b16 %v460
      %v477 = vunpack.c.l.b16 %v461
      %v478 = vunpack.c.l.b16 %v462
      %v479 = vunpack.c.l.b16 %v463
      %v480 = vunpack.c.l.b16 %v464
      %v481 = vunpack.c.l.b16 %v465
      %v482 = vunpack.c.l.b16 %v466
      %v483 = vpack.c.b16 %v476, %v475
      %v484 = vpack.c.b16 %v478, %v477
      %v485 = vpack.c.b16 %v480, %v479
      %v486 = vpack.c.b16 %v482, %v481
      %v492 = vsel %vm357, %v458, 0
      %494 = vmatprep.subr.bf16.mxu0 0
      %495 = vmatpush1.bf16.msra.mxu0 %v483
      %496 = vmatprep.subr.bf16.mxu0 0
      %497 = vmatpush1.bf16.msra.mxu0 %v484
      %498 = vmatprep.subr.bf16.mxu0 0
      %499 = vmatpush1.bf16.msra.mxu0 %v485
      %500 = vmatprep.subr.bf16.mxu0 0
      %501 = vmatpush1.bf16.msra.mxu0 %v486
      %502 = vmatprep.subr.bf16.mxu0 0
      %503 = vmatpush1.bf16.msra.mxu0 0
      %504 = vmatprep.subr.bf16.mxu0 0
      %505 = vmatpush1.bf16.msra.mxu0 0
      %506 = vmatprep.subr.bf16.mxu0 0
      %507 = vmatpush1.bf16.msra.mxu0 0
      %508 = vmatprep.subr.bf16.mxu0 0
      %509 = vmatpush1.bf16.msra.mxu0 0
      %510 = vmatprep.subr.bf16.mxu0 0
      %511 = vmatpush1.bf16.msra.mxu0 0
      %512 = vmatprep.subr.bf16.mxu0 0
      %513 = vmatpush1.bf16.msra.mxu0 0
      %514 = vmatprep.subr.bf16.mxu0 0
      %515 = vmatpush1.bf16.msra.mxu0 0
      %516 = vmatprep.subr.bf16.mxu0 0
      %517 = vmatpush1.bf16.msra.mxu0 0
      %518 = vmatprep.subr.bf16.mxu0 0
      %519 = vmatpush1.bf16.msra.mxu0 0
      %520 = vmatprep.subr.bf16.mxu0 0
      %521 = vmatpush1.bf16.msra.mxu0 0
      %522 = vmatprep.subr.bf16.mxu0 0
      %523 = vmatpush1.bf16.msra.mxu0 0
      %524 = vmatprep.subr.bf16.mxu0 0
      %525 = vmatpush1.bf16.msra.mxu0 0
      %526 = vmatprep.mubr.bf16.mxu0 0
      %527 = vmatmul.mubr.bf16.gmra.mrb[0].mxu0 %v492
      %v528 = vpop.f32.mrb[0].mxu0
      %v529 = vadd.f32 0.0, %v528
      %v530 = vpop.f32.mrb[0].mxu0
      %v531 = vpop.f32.mrb[0].mxu0
      %v532 = vpop.f32.mrb[0].mxu0
      %533 = vdwg.mxu0
      %v534 = vpack.c.bf16 %v529, %v529
      %v535 = vld [vmem:[%s6] sm:$0x1]
      %v537 = vlaneseq
      %v538 = vshrl.u32 %v537, 7
      %v539 = vsub.s32 0, %v538
      %v540 = vrot.slane %v535, %v539
      %v543 = vsel %vm412, %v534, 0
      %545 = vmatprep.subr.bf16.mxu0 0
      %546 = vmatpush1.bf16.msra.mxu0 %v543
      %547 = vmatprep.subr.bf16.mxu0 0
      %548 = vmatpush1.bf16.msra.mxu0 0
      %549 = vmatprep.subr.bf16.mxu0 0
      %550 = vmatpush1.bf16.msra.mxu0 0
      %551 = vmatprep.subr.bf16.mxu0 0
      %552 = vmatpush1.bf16.msra.mxu0 0
      %553 = vmatprep.subr.bf16.mxu0 0
      %554 = vmatpush1.bf16.msra.mxu0 0
      %555 = vmatprep.subr.bf16.mxu0 0
      %556 = vmatpush1.bf16.msra.mxu0 0
      %557 = vmatprep.subr.bf16.mxu0 0
      %558 = vmatpush1.bf16.msra.mxu0 0
      %559 = vmatprep.subr.bf16.mxu0 0
      %560 = vmatpush1.bf16.msra.mxu0 0
      %561 = vmatprep.subr.bf16.mxu0 0
      %562 = vmatpush1.bf16.msra.mxu0 0
      %563 = vmatprep.subr.bf16.mxu0 0
      %564 = vmatpush1.bf16.msra.mxu0 0
      %565 = vmatprep.subr.bf16.mxu0 0
      %566 = vmatpush1.bf16.msra.mxu0 0
      %567 = vmatprep.subr.bf16.mxu0 0
      %568 = vmatpush1.bf16.msra.mxu0 0
      %569 = vmatprep.subr.bf16.mxu0 0
      %570 = vmatpush1.bf16.msra.mxu0 0
      %571 = vmatprep.subr.bf16.mxu0 0
      %572 = vmatpush1.bf16.msra.mxu0 0
      %573 = vmatprep.subr.bf16.mxu0 0
      %574 = vmatpush1.bf16.msra.mxu0 0
      %575 = vmatprep.subr.bf16.mxu0 0
      %576 = vmatpush1.bf16.msra.mxu0 0
      %577 = vmatprep.mubr.bf16.mxu0 0
      %578 = vmatmul.mubr.bf16.gmra.mrb[0].mxu0 %v410
      %v579 = vpop.f32.mrb[0].mxu0
      %v580 = vadd.f32 %v540, %v579
      %v581 = vpop.f32.mrb[0].mxu0
      %v582 = vpop.f32.mrb[0].mxu0
      %v583 = vpop.f32.mrb[0].mxu0
      %584 = vdwg.mxu0
      %v585 = vmax.f32 %v580, 0.0
      %v586 = vpack.c.bf16 %v308, %v308
      %587 = vset.pattern.permute.xlu0 1
      %588 = vperm.xlu0 %587, %v307
      %v589 = vpop.permute.xlu0 %588
      %v591 = vmul.f32 %v589, %v585
      %v592 = vsel %vm357, %v591, 0.0
      %v593 = vrot.slane %v592, 4
      %v594 = vadd.f32 %v592, %v593
      %v595 = vrot.slane %v594, 2
      %v596 = vadd.f32 %v594, %v595
      %v597 = vrot.slane %v596, 1
      %v598 = vadd.f32 %v596, %v597
      %v599 = vpack.c.bf16 %v598, %v598
      %v601 = vsel %vm357, %v599, 0
      %v604 = vsel %vm357, %v586, 0
      %606 = vmatprep.subr.bf16.mxu0 0
      %607 = vmatpush1.bf16.xpose.msra.mxu0 %v604
      %608 = vmatprep.subr.bf16.mxu0 0
      %609 = vmatpush1.bf16.xpose.msra.mxu0 0
      %610 = vmatprep.subr.bf16.mxu0 0
      %611 = vmatpush1.bf16.xpose.msra.mxu0 0
      %612 = vmatprep.subr.bf16.mxu0 0
      %613 = vmatpush1.bf16.xpose.msra.mxu0 0
      %614 = vmatprep.subr.bf16.mxu0 0
      %615 = vmatpush1.bf16.xpose.msra.mxu0 0
      %616 = vmatprep.subr.bf16.mxu0 0
      %617 = vmatpush1.bf16.xpose.msra.mxu0 0
      %618 = vmatprep.subr.bf16.mxu0 0
      %619 = vmatpush1.bf16.xpose.msra.mxu0 0
      %620 = vmatprep.subr.bf16.mxu0 0
      %621 = vmatpush1.bf16.xpose.msra.mxu0 0
      %622 = vmatprep.subr.bf16.mxu0 0
      %623 = vmatpush1.bf16.xpose.msra.mxu0 0
      %624 = vmatprep.subr.bf16.mxu0 0
      %625 = vmatpush1.bf16.xpose.msra.mxu0 0
      %626 = vmatprep.subr.bf16.mxu0 0
      %627 = vmatpush1.bf16.xpose.msra.mxu0 0
      %628 = vmatprep.subr.bf16.mxu0 0
      %629 = vmatpush1.bf16.xpose.msra.mxu0 0
      %630 = vmatprep.subr.bf16.mxu0 0
      %631 = vmatpush1.bf16.xpose.msra.mxu0 0
      %632 = vmatprep.subr.bf16.mxu0 0
      %633 = vmatpush1.bf16.xpose.msra.mxu0 0
      %634 = vmatprep.subr.bf16.mxu0 0
      %635 = vmatpush1.bf16.xpose.msra.mxu0 0
      %636 = vmatprep.subr.bf16.mxu0 0
      %637 = vmatpush1.bf16.xpose.msra.mxu0 0
      %638 = vmatprep.mubr.bf16.mxu0 0
      %639 = vmatmul.mubr.bf16.gmra.mrb[0].mxu0 %v601
      %v640 = vpop.f32.mrb[0].mxu0
      %v641 = vadd.f32 0.0, %v640
      %v642 = vpop.f32.mrb[0].mxu0
      %v643 = vpop.f32.mrb[0].mxu0
      %v644 = vpop.f32.mrb[0].mxu0
      %645 = vdwg.mxu0
      %vm646 = vcmask 57344
      %v647 = vsel %vm646, %v641, -inf
      %648 = vmax.xlane.f32.xlu0 %v647
      %v649 = vpop.xlane.xlu0 %648
      %v650 = vsub.f32 %v641, %v649
      %v651 = vmul.f32 %v650, 1.442695
      %v652 = vpow.pop %v651
      %v653 = vsel %vm646, %v652, 0.0
      %654 = vadd.xlane.f32.xlu0 %v653
      %v655 = vpop.xlane.xlu0 %654
      %v656 = vrcp.pop %v655
      %v657 = vmul.f32 %v652, %v656
      %v658 = vpack.c.bf16 %v657, %v657
      %v660 = vsel %vm310, %v658, 0
      %v662 = vsel %vm412, %v586, 0
      %664 = vmatprep.subr.bf16.mxu0 0
      %665 = vmatpush1.bf16.msra.mxu0 %v662
      %666 = vmatprep.subr.bf16.mxu0 0
      %667 = vmatpush1.bf16.msra.mxu0 0
      %668 = vmatprep.subr.bf16.mxu0 0
      %669 = vmatpush1.bf16.msra.mxu0 0
      %670 = vmatprep.subr.bf16.mxu0 0
      %671 = vmatpush1.bf16.msra.mxu0 0
      %672 = vmatprep.subr.bf16.mxu0 0
      %673 = vmatpush1.bf16.msra.mxu0 0
      %674 = vmatprep.subr.bf16.mxu0 0
      %675 = vmatpush1.bf16.msra.mxu0 0
      %676 = vmatprep.subr.bf16.mxu0 0
      %677 = vmatpush1.bf16.msra.mxu0 0
      %678 = vmatprep.subr.bf16.mxu0 0
      %679 = vmatpush1.bf16.msra.mxu0 0
      %680 = vmatprep.subr.bf16.mxu0 0
      %681 = vmatpush1.bf16.msra.mxu0 0
      %682 = vmatprep.subr.bf16.mxu0 0
      %683 = vmatpush1.bf16.msra.mxu0 0
      %684 = vmatprep.subr.bf16.mxu0 0
      %685 = vmatpush1.bf16.msra.mxu0 0
      %686 = vmatprep.subr.bf16.mxu0 0
      %687 = vmatpush1.bf16.msra.mxu0 0
      %688 = vmatprep.subr.bf16.mxu0 0
      %689 = vmatpush1.bf16.msra.mxu0 0
      %690 = vmatprep.subr.bf16.mxu0 0
      %691 = vmatpush1.bf16.msra.mxu0 0
      %692 = vmatprep.subr.bf16.mxu0 0
      %693 = vmatpush1.bf16.msra.mxu0 0
      %694 = vmatprep.subr.bf16.mxu0 0
      %695 = vmatpush1.bf16.msra.mxu0 0
      %696 = vmatprep.mubr.bf16.mxu0 0
      %697 = vmatmul.mubr.bf16.gmra.mrb[0].mxu0 %v660
      %v698 = vpop.f32.mrb[0].mxu0
      %v699 = vadd.f32 0.0, %v698
      %v700 = vpop.f32.mrb[0].mxu0
      %v701 = vpop.f32.mrb[0].mxu0
      %v702 = vpop.f32.mrb[0].mxu0
      %703 = vdwg.mxu0
      %vm704 = vcmask 516096
      %705 = vst.msk [vmem:[%s305] sm:$0x1] %vm704, %v699
      %p706 = scmp.lt.s32.totalorder %s18, 1
      %s707 = scalar_select %p706, %s18, 1
      %s708 = scalar_lea.vmem %s7, %s707
      // Predicated region
      $region49: #{asgcn_forward.1} parent=47 // pred_check
        %p709 = pneg %p198
      $region50: #{asgcn_forward.1} parent=47 // pred_check_branch
        %711 = sbr.rel (%p709) target = $region52
      $region51: #{asgcn_forward.1} parent=47 // pred_region
        _
      $region52: #{asgcn_forward.1} parent=47 // pred_fallthru
        _
    $region48: #{asgcn_forward.1} parent=5 // pred_fallthru
      _
    %p712 = scmp.le.s32.totalorder 2, %s13
    // Predicated region
    $region53: #{asgcn_forward.1} parent=5 // pred_check
      %p713 = pneg %p712
    $region54: #{asgcn_forward.1} parent=5 // pred_check_branch
      %715 = sbr.rel (%p713) target = $region56
    $region55: #{asgcn_forward.1} parent=5 // pred_region
      %s716 = ssub.s32 %s13, 2
      // Predicated region
      $region57: #{asgcn_forward.1} parent=55 // pred_check
        %p717 = pneg %p204
      $region58: #{asgcn_forward.1} parent=55 // pred_check_branch
        %719 = sbr.rel (%p717) target = $region60
      $region59: #{asgcn_forward.1} parent=55 // pred_region
        %p720 = scmp.lt.s32.totalorder %s19, 1
        %s721 = scalar_select %p720, %s19, 1
        %s722 = scalar_lea.vmem %s7, %s721
      $region60: #{asgcn_forward.1} parent=55 // pred_fallthru
        _
    $region56: #{asgcn_forward.1} parent=5 // pred_fallthru
      _
  $region6: #{asgcn_forward.1} parent=0 // loop_footer
    %s17 = sadd.s32 1, %s13
  $region7: #{asgcn_forward.1} parent=0 // loop_footer_branch
    %12 = sbr.rel target = $region3
  $region8: #{asgcn_forward.1} parent=0 // loop_exit
    _

</llo_original>
